<compile_context>
chip_gen: v6e
topology: v6e:2x2x1
jax: 0.10.0
libtpu: 0.0.40
codegen_flags: <defaults>
</compile_context>

<pallas_src>
import jax
import jax.numpy as jnp
from jax import lax
from jax.experimental import pallas as pl
from jax.experimental.pallas import tpu as pltpu

_LANES = 128
_MAX_BLOCK_ROWS = 2048  # 2048 x 128 x 4B = 1 MiB per output block (2 MiB double-buffered)


def _mix32(h):
    """murmur3 fmix32 finalizer on uint32 values (pure VPU shifts/xors/muls)."""
    h = h ^ (h >> jnp.uint32(16))
    h = h * jnp.uint32(0x85EBCA6B)
    h = h ^ (h >> jnp.uint32(13))
    h = h * jnp.uint32(0xC2B2AE35)
    h = h ^ (h >> jnp.uint32(16))
    return h


def _rand_kernel(seed_ref, o_ref):
    # seed_ref: SMEM (1,) int32 ; o_ref: VMEM (block_rows, 128) float32
    block_rows, lanes = o_ref.shape

    # Global flat element index for every slot of this block (block offset included
    # so each grid step produces an independent stream -> safe for "parallel" grid).
    row = lax.broadcasted_iota(jnp.int32, (block_rows, lanes), 0)
    lane = lax.broadcasted_iota(jnp.int32, (block_rows, lanes), 1)
    base_row = pl.program_id(0) * block_rows
    gidx = ((base_row + row) * lanes + lane).astype(jnp.uint32)

    seed = seed_ref[0].astype(jnp.uint32)
    # Two mixing rounds on a well-spread input (golden-ratio stride + seed).
    h = gidx * jnp.uint32(0x9E3779B9) + seed
    h = _mix32(h)
    h = _mix32(h ^ (seed * jnp.uint32(0x85EBCA6B) + jnp.uint32(0x27D4EB2F)))

    # Top 24 random bits -> uniform [0, 1): value / 2^24.  The int32 path keeps
    # the integer->float convert on the well-supported signed path.
    r24 = (h >> jnp.uint32(8)).astype(jnp.int32)
    o_ref[...] = r24.astype(jnp.float32) * jnp.float32(1.0 / (1 << 24))


def _round_up(x, m):
    return ((x + m - 1) // m) * m


def _uniform_rand(num_values, seed):
    """Generate `num_values` uniform [0,1) float32 values with a Pallas kernel."""
    rows = pl.cdiv(max(num_values, 1), _LANES)
    if rows <= _MAX_BLOCK_ROWS:
        # Small/medium path: single block, rows padded to the (8,128) min tile.
        block_rows = max(8, _round_up(rows, 8))
        rows_pad = block_rows
    else:
        block_rows = _MAX_BLOCK_ROWS
        rows_pad = _round_up(rows, _MAX_BLOCK_ROWS)
    grid = (rows_pad // block_rows,)

    rand_slab = pl.pallas_call(
        _rand_kernel,
        out_shape=jax.ShapeDtypeStruct((rows_pad, _LANES), jnp.float32),
        grid=grid,
        in_specs=[pl.BlockSpec(memory_space=pltpu.MemorySpace.SMEM)],
        out_specs=pl.BlockSpec((block_rows, _LANES), lambda i: (i, 0)),
        compiler_params=pltpu.CompilerParams(
            dimension_semantics=("parallel",)),
    )(jnp.asarray([seed], dtype=jnp.int32))

    # Contiguous prefix of the flat slab (no strided lane-0 gather).
    return rand_slab.reshape(-1)[:num_values]


class SpGraphTransAttentionLayer:
    """JAX/Pallas port.  Parameters from __init__ are unused by forward (exactly
    as in the reference module), so only the config is stored."""

    def __init__(self, in_features, out_features, opt=None, device=None, edge_weights=None):
        self.in_features = in_features
        self.out_features = out_features
        self.opt = opt
        self.device = device
        self.edge_weights = edge_weights
        # TODO(synk): the reference forward never touches learned weights; nothing
        # to initialize beyond config.

    def __call__(self, x, edge_index, seed=0):
        return self.forward(x, edge_index, seed)

    def forward(self, x, edge_index, seed=0):
        # TODO(synk): torch's requires_grad=True on the random tensor has no JAX
        # equivalent here (no autograd leaf semantics for a constant sample).
        E = int(edge_index.shape[1])
        if E == 0:
            return jnp.zeros((0, 1), dtype=jnp.float32), None
        att = _uniform_rand(E, seed).reshape(E, 1)  # (E, 1) float32, uniform [0, 1)
        return att, None


if __name__ == "__main__":
    key = jax.random.PRNGKey(0)
    kx, ke = jax.random.split(key)

    num_nodes = 16
    in_features = 32
    out_features = 32
    num_edges = 8

    x = jax.random.normal(kx, (num_nodes, in_features), dtype=jnp.float32)
    edge_index = jax.random.randint(ke, (2, num_edges), 0, num_nodes, dtype=jnp.int32)

    layer = SpGraphTransAttentionLayer(in_features, out_features, opt={}, device=None)
    att, second = layer(x, edge_index, seed=0)
    att = jax.block_until_ready(att)

    assert att.shape == (num_edges, 1), att.shape
    assert att.dtype == jnp.float32
    assert second is None
    assert bool(jnp.all(att >= 0.0)) and bool(jnp.all(att < 1.0))
    # Values should not all be identical (sanity check on the per-element hashing).
    assert bool(jnp.max(att) > jnp.min(att))

    print("KERNEL_OK")
</pallas_src>

<mosaic_0001>
module attributes {stable_mosaic.version = 11 : i64} {
  func.func @_rand_kernel(%arg0: i32, %arg1: memref<1xi32, #tpu.memory_space<smem>>, %arg2: memref<8x128xf32, #tpu.memory_space<vmem>>) attributes {dimension_semantics = [#tpu.dimension_semantics<parallel>], iteration_bounds = array<i64: 1>, scalar_prefetch = 0 : i64, scratch_operands = 0 : i64, tpu.core_type = #tpu.core_type<tc>, window_params = [{transform_indices = @transform_0, window_bounds = array<i64: 1>}, {transform_indices = @transform_1, window_bounds = array<i64: 8, 128>}]} {
    %0 = tpu.iota {dimensions = array<i32: 0>} : vector<8x128xi32>
    %1 = tpu.iota {dimensions = array<i32: 1>} : vector<8x128xi32>
    %c8_i32 = arith.constant 8 : i32
    %2 = arith.muli %arg0, %c8_i32 : i32
    %3 = vector.broadcast %2 : i32 to vector<8x128xi32>
    %4 = arith.addi %3, %0 : vector<8x128xi32>
    %c128_i32 = arith.constant 128 : i32
    %5 = vector.broadcast %c128_i32 : i32 to vector<8x128xi32>
    %6 = arith.muli %4, %5 : vector<8x128xi32>
    %7 = arith.addi %6, %1 : vector<8x128xi32>
    %c0 = arith.constant 0 : index
    %8 = memref.load %arg1[%c0] : memref<1xi32, #tpu.memory_space<smem>>
    %c-1640531527_i32 = arith.constant -1640531527 : i32
    %9 = vector.broadcast %c-1640531527_i32 : i32 to vector<8x128xi32>
    %10 = arith.muli %7, %9 : vector<8x128xi32>
    %11 = vector.broadcast %8 : i32 to vector<8x128xi32>
    %12 = arith.addi %10, %11 : vector<8x128xi32>
    %c16_i32 = arith.constant 16 : i32
    %13 = vector.broadcast %c16_i32 : i32 to vector<8x128xi32>
    %14 = arith.shrui %12, %13 : vector<8x128xi32>
    %15 = arith.xori %12, %14 : vector<8x128xi32>
    %c-2048144789_i32 = arith.constant -2048144789 : i32
    %16 = vector.broadcast %c-2048144789_i32 : i32 to vector<8x128xi32>
    %17 = arith.muli %15, %16 : vector<8x128xi32>
    %c13_i32 = arith.constant 13 : i32
    %18 = vector.broadcast %c13_i32 : i32 to vector<8x128xi32>
    %19 = arith.shrui %17, %18 : vector<8x128xi32>
    %20 = arith.xori %17, %19 : vector<8x128xi32>
    %c-1028477387_i32 = arith.constant -1028477387 : i32
    %21 = vector.broadcast %c-1028477387_i32 : i32 to vector<8x128xi32>
    %22 = arith.muli %20, %21 : vector<8x128xi32>
    %c16_i32_0 = arith.constant 16 : i32
    %23 = vector.broadcast %c16_i32_0 : i32 to vector<8x128xi32>
    %24 = arith.shrui %22, %23 : vector<8x128xi32>
    %25 = arith.xori %22, %24 : vector<8x128xi32>
    %c-2048144789_i32_1 = arith.constant -2048144789 : i32
    %26 = arith.muli %8, %c-2048144789_i32_1 : i32
    %c668265263_i32 = arith.constant 668265263 : i32
    %27 = arith.addi %26, %c668265263_i32 : i32
    %28 = vector.broadcast %27 : i32 to vector<8x128xi32>
    %29 = arith.xori %25, %28 : vector<8x128xi32>
    %c16_i32_2 = arith.constant 16 : i32
    %30 = vector.broadcast %c16_i32_2 : i32 to vector<8x128xi32>
    %31 = arith.shrui %29, %30 : vector<8x128xi32>
    %32 = arith.xori %29, %31 : vector<8x128xi32>
    %c-2048144789_i32_3 = arith.constant -2048144789 : i32
    %33 = vector.broadcast %c-2048144789_i32_3 : i32 to vector<8x128xi32>
    %34 = arith.muli %32, %33 : vector<8x128xi32>
    %c13_i32_4 = arith.constant 13 : i32
    %35 = vector.broadcast %c13_i32_4 : i32 to vector<8x128xi32>
    %36 = arith.shrui %34, %35 : vector<8x128xi32>
    %37 = arith.xori %34, %36 : vector<8x128xi32>
    %c-1028477387_i32_5 = arith.constant -1028477387 : i32
    %38 = vector.broadcast %c-1028477387_i32_5 : i32 to vector<8x128xi32>
    %39 = arith.muli %37, %38 : vector<8x128xi32>
    %c16_i32_6 = arith.constant 16 : i32
    %40 = vector.broadcast %c16_i32_6 : i32 to vector<8x128xi32>
    %41 = arith.shrui %39, %40 : vector<8x128xi32>
    %42 = arith.xori %39, %41 : vector<8x128xi32>
    %c8_i32_7 = arith.constant 8 : i32
    %43 = vector.broadcast %c8_i32_7 : i32 to vector<8x128xi32>
    %44 = arith.shrui %42, %43 : vector<8x128xi32>
    %45 = arith.sitofp %44 : vector<8x128xi32> to vector<8x128xf32>
    %cst = arith.constant 5.96046448E-8 : f32
    %46 = vector.broadcast %cst : f32 to vector<8x128xf32>
    %47 = arith.mulf %45, %46 : vector<8x128xf32>
    %c0_8 = arith.constant 0 : index
    %c0_9 = arith.constant 0 : index
    %48 = vector.load %arg2[%c0_8, %c0_9] : memref<8x128xf32, #tpu.memory_space<vmem>>, vector<8x128xf32>
    tpu.vector_store %arg2[%c0_8, %c0_9], %47 {strides = array<i32>} : memref<8x128xf32, #tpu.memory_space<vmem>>, vector<8x128xf32>,
    return
  }
  func.func @transform_0(%arg0: i32) -> i32 {
    %c0_i32 = arith.constant 0 : i32
    %c0_i32_0 = arith.constant 0 : i32
    return %c0_i32 : i32
  }
  func.func @transform_1(%arg0: i32) -> (i32, i32) {
    %c0_i32 = arith.constant 0 : i32
    %c0_i32_0 = arith.constant 0 : i32
    return %arg0, %c0_i32 : i32, i32
  }
}

</mosaic_0001>

<llo_original>
// kernel: tpu_custom_call.1
$region0: #{tpu_custom_call.1}
  #allocation0 [shape = 'u32[]', space=smem, size = 0x4, offset = 0x4, fixed_abs, tag = 'smem constant byte address 0x4 - core index']
  #allocation1 [shape = 'u32[144,128]{1,0:T(1,128)}', space=vmem, size = 0x12000, scoped, tag = 'internal scratch']
  #allocation2 [shape = 's32[1]{0:T(128)S(6)}', space=smem, size = 0x200, scoped, tag = 'scoped memory for tpu_custom_call.1']
  %s0 = inlined_call_operand.<no memory space> [shape: s32[1], index: 0, kind: input, shape index: {}]
  %s1 = inlined_call_operand.hbm [shape: f32[8,128], index: 1, kind: output, shape index: {}]
  %s2 = sld [smem:[#allocation0]]
  $region14: #{tpu_custom_call.1} parent=0
    _
  %s4 = ssub.s32 1, %s2
  %s5 = scalar_select 0, %s4, %s2
  %6 = sst [smem:[#allocation2]] %s0
  $region1: #{tpu_custom_call.1} parent=0
    #allocation3 [shape = 'u8[4096]{0}', space=vmem, size = 0x1000, scoped, tag = 'output window, operand 0, single buffered']
    #allocation4 [shape = 's32[1]{0}', space=sflag, size = 0x4, scoped, tag = 'scoped memory for tpu_custom_call.1']
    %7 = vsyncpa [#allocation4], 0
    // Predicated region
    $region2: #{tpu_custom_call.1} parent=1 // pred_check
      _
    $region3: #{tpu_custom_call.1} parent=1 // pred_check_branch
      %9 = sbr.rel (0) target = $region5
    $region4: #{tpu_custom_call.1} parent=1 // pred_region
      _
    $region5: #{tpu_custom_call.1} parent=1 // pred_fallthru
      _
    %v10 = vlaneseq
    %v11 = vshrl.u32 %v10, 7
    %v12 = vlaneseq
    %v13 = vand.u32 %v12, 127
    %s14 = smul.u32 0, 8
    %v15 = vstv %s14
    %v16 = vadd.s32 %v15, %v11
    %v17 = vmul.u32 %v16, 128
    %v18 = vadd.s32 %v17, %v13
    %s19 = sld [smem:[#allocation2]]
    %v20 = vmul.u32 %v18, 2654435769
    %v21 = vstv %s19
    %v22 = vadd.s32 %v20, %v21
    %v23 = vshrl.u32 %v22, 16
    %v24 = vxor.u32 %v22, %v23
    %v25 = vmul.u32 %v24, 2246822507
    %v26 = vshrl.u32 %v25, 13
    %v27 = vxor.u32 %v25, %v26
    %v28 = vmul.u32 %v27, 3266489909
    %v29 = vshrl.u32 %v28, 16
    %v30 = vxor.u32 %v28, %v29
    %s31 = smul.u32 %s19, 2246822507
    %s32 = sadd.s32 %s31, 668265263
    %v33 = vstv %s32
    %v34 = vxor.u32 %v30, %v33
    %v35 = vshrl.u32 %v34, 16
    %v36 = vxor.u32 %v34, %v35
    %v37 = vmul.u32 %v36, 2246822507
    %v38 = vshrl.u32 %v37, 13
    %v39 = vxor.u32 %v37, %v38
    %v40 = vmul.u32 %v39, 3266489909
    %v41 = vshrl.u32 %v40, 16
    %v42 = vxor.u32 %v40, %v41
    %v43 = vshrl.u32 %v42, 8
    %v44 = vcvt.s32.f32 %v43
    %v45 = vmul.f32 %v44, 5.9604645e-08
    %46 = vst [vmem:[#allocation3] sm:$0xff] %v45
    // Predicated region
    $region6: #{tpu_custom_call.1} parent=1 // pred_check
      _
    $region7: #{tpu_custom_call.1} parent=1 // pred_check_branch
      %48 = sbr.rel (0) target = $region9
    $region8: #{tpu_custom_call.1} parent=1 // pred_region
      %s50 = ssub.s32 128, 128
      %51 = vsyncadd [#allocation4], %s50
      %s53 = sshll.u32 [#allocation3], 4
      %s54 = int_to_ptr.vmem [resolvable:$true] %s53
      %56 = dma.vmem_to_hbm [thread:$0]  %s54, 128, %s1, [#allocation4]
    $region9: #{tpu_custom_call.1} parent=1 // pred_fallthru
      _
    // Predicated region
    $region10: #{tpu_custom_call.1} parent=1 // pred_check
      _
    $region11: #{tpu_custom_call.1} parent=1 // pred_check_branch
      %58 = sbr.rel (0) target = $region13
    $region12: #{tpu_custom_call.1} parent=1 // pred_region
      %59 = dma.done [#allocation4], 128
    $region13: #{tpu_custom_call.1} parent=1 // pred_fallthru
      _
    %60 = vsyncpa [#allocation4], 1

</llo_original>
